<compile_context>
chip_gen: v7x
topology: tpu7x:2x2x1
jax: 0.10.0
libtpu: 0.0.40
codegen_flags: <defaults>
</compile_context>

<pallas_src>
import functools

import jax
import jax.numpy as jnp
from jax.experimental import pallas as pl
from jax.experimental.pallas import tpu as pltpu

EPS = 1e-5


def _round_up(x, m):
    return pl.cdiv(x, m) * m


def _add_and_norm_kernel(x_ref, w_ref, b_ref, o_ref, *, feat):
    """One (TM, Fp) row tile: out = x + x_hat @ W' + b' (gamma/beta pre-folded)."""
    x = x_ref[...].astype(jnp.float32)
    fp = x.shape[-1]

    # Mean over the real `feat` lanes (padded lanes of x are zero, so the plain
    # sum equals the masked sum).
    mean = jnp.sum(x, axis=-1, keepdims=True) * (1.0 / feat)
    centered = x - mean
    if feat == fp:
        # Trace-time branch: no iota/compare/select when F is lane-aligned.
        centered_m = centered
    else:
        lane_mask = jax.lax.broadcasted_iota(jnp.int32, (1, fp), 1) < feat
        centered_m = jnp.where(lane_mask, centered, 0.0)

    # torch.std semantics: unbiased (N-1); denominator is (std + eps).
    # NOTE: feat == 1 divides by zero (torch also produces NaN there).
    var_unbiased = jnp.sum(centered_m * centered_m, axis=-1, keepdims=True) * (
        1.0 / (feat - 1))
    inv = pl.reciprocal(jnp.sqrt(var_unbiased) + EPS, approx=True)  # EUP slot
    x_hat = centered * inv

    # Sublayer Linear with gamma/beta folded into (W', b'); operands in the weight
    # dtype (bf16 by default) with f32 accumulation on the MXU.  Padded ROWS of W'
    # are zero, so padded lanes of x_hat never contaminate the result.
    sub = jnp.dot(x_hat.astype(w_ref.dtype), w_ref[...],
                  preferred_element_type=jnp.float32)
    sub = sub + b_ref[...]

    # Dropout in eval mode == identity.
    # TODO(synk): training-mode dropout would need pltpu.prng_seed / prng_random_bits.
    o_ref[...] = (x + sub).astype(o_ref.dtype)


def add_and_norm(residual, w, b, gamma, beta, *, tile_rows=256,
                 weight_dtype=jnp.bfloat16):
    """residual: (B, S, F); w: (F, F); b / gamma / beta: (F,).

    weight_dtype: dtype the MXU matmul runs in (bf16 default: much faster MXU rate
    and half the resident-weight VMEM).  Pass jnp.float32 for exact f32 semantics.
    """
    B, S, F = residual.shape
    rows = B * S
    in_item = jnp.dtype(residual.dtype).itemsize
    w_item = jnp.dtype(weight_dtype).itemsize

    # --- Fold LayerNorm affine into the linear sublayer (once, in f32) ----------
    #   gamma * x_hat + beta  ->  W' = gamma[:, None] * W ;  b' = beta @ W + b
    w_f32 = w.astype(jnp.float32)
    w_fold = (gamma.astype(jnp.float32)[:, None] * w_f32).astype(weight_dtype)
    b_fold = beta.astype(jnp.float32) @ w_f32 + b.astype(jnp.float32)

    # --- Layout: (rows, F); pad features ONLY when not lane-aligned -------------
    Fp = F if F % 128 == 0 else _round_up(F, 128)
    x2d = residual.reshape(rows, F)
    if Fp != F:
        # Uncommon case: costs one extra HBM pass over the activations.
        x2d = jnp.zeros((rows, Fp), residual.dtype).at[:, :F].set(x2d)
        w_fold = jnp.zeros((Fp, Fp), weight_dtype).at[:F, :F].set(w_fold)
        b_fold = jnp.zeros((Fp,), jnp.float32).at[:F].set(b_fold)
    b2d = b_fold.reshape(1, Fp)

    # --- Grid: rows tiled, never padded (partial last tile is masked on write) --
    TM = _round_up(min(tile_rows, rows), 8)
    grid = (pl.cdiv(rows, TM),)

    # --- Resident-weight buffering & VMEM budget --------------------------------
    # Constant index_map => fetched once.  Once the weight is big enough to matter,
    # single-buffer it so a second Fp*Fp copy doesn't sit in VMEM (v7x: 64 MiB).
    w_spec_kwargs = {}
    w_bufs = 2
    if Fp * Fp * w_item >= (4 << 20):
        w_spec_kwargs = dict(pipeline_mode=pl.Buffered(1))
        w_bufs = 1
    # TODO(synk): for F >= ~4K on v7x, add a second grid axis tiling W's output
    # features (TN ~ 512-1024) and cache the x_hat tile in VMEM scratch at j == 0.
    # TODO(synk): fp8 weights on v7x once compute-bound (large F, bf16 I/O).

    vmem_needed = (
        2 * TM * Fp * in_item          # x tiles (double-buffered)
        + 2 * TM * Fp * in_item        # out tiles (double-buffered)
        + w_bufs * Fp * Fp * w_item    # resident weight
        + 2 * Fp * 4                   # bias
        + 4 * TM * Fp * 4)             # f32 temporaries in the body (rough)
    vmem_limit = int(min(128 << 20, max(32 << 20, vmem_needed * 5 // 4 + (2 << 20))))

    cost = pl.CostEstimate(
        flops=2 * rows * Fp * Fp + 8 * rows * Fp,
        transcendentals=2 * rows,                      # sqrt + reciprocal per row
        bytes_accessed=2 * rows * Fp * in_item + Fp * Fp * w_item + Fp * 4,
    )

    kernel = functools.partial(_add_and_norm_kernel, feat=F)
    out = pl.pallas_call(
        kernel,
        out_shape=jax.ShapeDtypeStruct((rows, Fp), residual.dtype),
        grid_spec=pltpu.PrefetchScalarGridSpec(
            num_scalar_prefetch=0,
            grid=grid,
            in_specs=[
                # Row-tiled activations, pipelined by Pallas.
                # TODO(synk): sweep pipeline_mode=pl.Buffered(3) here if profiling
                # shows exposed DMA in the small-F memory-bound regime.
                pl.BlockSpec((TM, Fp), lambda i: (i, 0)),
                # Folded weight / bias: constant index_map -> DMA'd once, resident.
                pl.BlockSpec((Fp, Fp), lambda i: (0, 0), **w_spec_kwargs),
                pl.BlockSpec((1, Fp), lambda i: (0, 0)),
            ],
            out_specs=pl.BlockSpec((TM, Fp), lambda i: (i, 0)),
        ),
        compiler_params=pltpu.CompilerParams(
            dimension_semantics=("parallel",),   # rows independent -> megacore
            vmem_limit_bytes=vmem_limit,
        ),
        cost_estimate=cost,
    )(x2d, w_fold, b2d)

    if Fp != F:
        out = out[:, :F]
    return out.reshape(B, S, F)


def _reference(residual, w, b, gamma, beta, *, matmul_dtype=jnp.float32):
    x = residual.astype(jnp.float32)
    n = x.shape[-1]
    mean = jnp.mean(x, axis=-1, keepdims=True)
    var_unbiased = jnp.sum((x - mean) ** 2, axis=-1, keepdims=True) / (n - 1)
    x_hat = (x - mean) / (jnp.sqrt(var_unbiased) + EPS)
    normed = gamma.astype(jnp.float32) * x_hat + beta.astype(jnp.float32)
    sub = jnp.dot(normed.astype(matmul_dtype), w.astype(matmul_dtype),
                  preferred_element_type=jnp.float32) + b.astype(jnp.float32)
    return (x + sub).astype(residual.dtype)


if __name__ == "__main__":
    key = jax.random.PRNGKey(0)
    kx, kw, kb, kg, kbe, kx2, kw2, kb2 = jax.random.split(key, 8)

    # --- Case A: F not lane-aligned (padded-feature path), even rows, f32 weights
    #     and non-trivial gamma/beta -> tight check of exact module semantics.
    B, S, F = 2, 8, 32
    residual = jax.random.normal(kx, (B, S, F), dtype=jnp.float32)
    w = jax.random.normal(kw, (F, F), dtype=jnp.float32) / jnp.sqrt(F)
    b = 0.01 * jax.random.normal(kb, (F,), dtype=jnp.float32)
    gamma = 1.0 + 0.1 * jax.random.normal(kg, (F,), dtype=jnp.float32)
    beta = 0.1 * jax.random.normal(kbe, (F,), dtype=jnp.float32)

    out_a = jax.block_until_ready(
        add_and_norm(residual, w, b, gamma, beta, tile_rows=8,
                     weight_dtype=jnp.float32))
    ref_a = _reference(residual, w, b, gamma, beta)
    assert out_a.shape == (B, S, F)
    assert jnp.allclose(out_a, ref_a, atol=5e-3, rtol=5e-3), "case A mismatch"

    # --- Case B: F lane-aligned (no pad / no mask), ragged rows (partial last
    #     tile), default bf16 weights; gamma/beta at their module-init values.
    B2, S2, F2 = 2, 7, 128
    residual2 = jax.random.normal(kx2, (B2, S2, F2), dtype=jnp.float32)
    w2 = jax.random.normal(kw2, (F2, F2), dtype=jnp.float32) / jnp.sqrt(F2)
    b2 = 0.01 * jax.random.normal(kb2, (F2,), dtype=jnp.float32)
    gamma2 = jnp.ones((F2,), jnp.float32)
    beta2 = jnp.zeros((F2,), jnp.float32)

    out_b = jax.block_until_ready(
        add_and_norm(residual2, w2, b2, gamma2, beta2, tile_rows=8))
    ref_b16 = _reference(residual2, w2, b2, gamma2, beta2, matmul_dtype=jnp.bfloat16)
    ref_b32 = _reference(residual2, w2, b2, gamma2, beta2)
    assert out_b.shape == (B2, S2, F2)
    assert jnp.allclose(out_b, ref_b16, atol=1e-2, rtol=1e-2), "case B mismatch (bf16)"
    assert jnp.allclose(out_b, ref_b32, atol=4e-2, rtol=4e-2), "case B mismatch (f32)"

    print("KERNEL_OK")
</pallas_src>

<mosaic_0001>
module attributes {stable_mosaic.version = 11 : i64} {
  func.func @_add_and_norm_kernel(%arg0: i32, %arg1: memref<8x128xf32, #tpu.memory_space<vmem>>, %arg2: memref<128x128xf32, #tpu.memory_space<vmem>>, %arg3: memref<1x128xf32, #tpu.memory_space<vmem>>, %arg4: memref<8x128xf32, #tpu.memory_space<vmem>>) attributes {dimension_semantics = [#tpu.dimension_semantics<parallel>], iteration_bounds = array<i64: 2>, scalar_prefetch = 0 : i64, scratch_operands = 0 : i64, tpu.core_type = #tpu.core_type<tc>, window_params = [{transform_indices = @transform_0, window_bounds = array<i64: 8, 128>}, {pipeline_mode = #tpu.pipeline_mode<synchronous>, transform_indices = @transform_1, window_bounds = array<i64: 128, 128>}, {pipeline_mode = #tpu.pipeline_mode<synchronous>, transform_indices = @transform_2, window_bounds = array<i64: 1, 128>}, {transform_indices = @transform_3, window_bounds = array<i64: 8, 128>}]} {
    %c0 = arith.constant 0 : index
    %c0_0 = arith.constant 0 : index
    %0 = vector.load %arg1[%c0, %c0_0] : memref<8x128xf32, #tpu.memory_space<vmem>>, vector<8x128xf32>
    %cst = arith.constant dense<0.000000e+00> : vector<8xf32>
    %1 = vector.multi_reduction <add>, %0, %cst [1] : vector<8x128xf32> to vector<8xf32>
    %2 = vector.shape_cast %1 : vector<8xf32> to vector<8x1xf32>
    %cst_1 = arith.constant 3.125000e-02 : f32
    %3 = vector.broadcast %cst_1 : f32 to vector<8x1xf32>
    %4 = arith.mulf %2, %3 : vector<8x1xf32>
    %5 = vector.broadcast %4 : vector<8x1xf32> to vector<8x128xf32>
    %6 = arith.subf %0, %5 : vector<8x128xf32>
    %7 = tpu.iota {dimensions = array<i32: 1>} : vector<1x128xi32>
    %c32_i32 = arith.constant 32 : i32
    %8 = vector.broadcast %c32_i32 : i32 to vector<1x128xi32>
    %9 = arith.cmpi slt, %7, %8 : vector<1x128xi32>
    %cst_2 = arith.constant 0.000000e+00 : f32
    %10 = vector.shape_cast %9 : vector<1x128xi1> to vector<1x128xi1>
    %11 = vector.broadcast %10 : vector<1x128xi1> to vector<8x128xi1>
    %12 = vector.broadcast %cst_2 : f32 to vector<8x128xf32>
    %13 = arith.select %11, %6, %12 : vector<8x128xi1>, vector<8x128xf32>
    %14 = arith.mulf %13, %13 : vector<8x128xf32>
    %cst_3 = arith.constant dense<0.000000e+00> : vector<8xf32>
    %15 = vector.multi_reduction <add>, %14, %cst_3 [1] : vector<8x128xf32> to vector<8xf32>
    %16 = vector.shape_cast %15 : vector<8xf32> to vector<8x1xf32>
    %cst_4 = arith.constant 0.0322580636 : f32
    %17 = vector.broadcast %cst_4 : f32 to vector<8x1xf32>
    %18 = arith.mulf %16, %17 : vector<8x1xf32>
    %19 = math.sqrt %18 : vector<8x1xf32>
    %cst_5 = arith.constant 9.99999974E-6 : f32
    %20 = vector.broadcast %cst_5 : f32 to vector<8x1xf32>
    %21 = arith.addf %19, %20 : vector<8x1xf32>
    %22 = tpu.reciprocal %21 {approx = true} : vector<8x1xf32> -> vector<8x1xf32>
    %23 = vector.broadcast %22 : vector<8x1xf32> to vector<8x128xf32>
    %24 = arith.mulf %6, %23 : vector<8x128xf32>
    %c0_6 = arith.constant 0 : index
    %c0_7 = arith.constant 0 : index
    %25 = vector.load %arg2[%c0_6, %c0_7] : memref<128x128xf32, #tpu.memory_space<vmem>>, vector<128x128xf32>
    %cst_8 = arith.constant dense<0.000000e+00> : vector<8x128xf32>
    %26 = tpu.matmul %24, %25, %cst_8 {dimension_numbers = #tpu.dot_dimension_numbers<[1], [0], [0], [1], [0, 0, 1, 1], [], []>} : vector<8x128xf32>, vector<128x128xf32>, vector<8x128xf32> -> vector<8x128xf32>
    %c0_9 = arith.constant 0 : index
    %c0_10 = arith.constant 0 : index
    %27 = vector.load %arg3[%c0_9, %c0_10] : memref<1x128xf32, #tpu.memory_space<vmem>>, vector<1x128xf32>
    %28 = vector.broadcast %27 : vector<1x128xf32> to vector<8x128xf32>
    %29 = arith.addf %26, %28 : vector<8x128xf32>
    %30 = arith.addf %0, %29 : vector<8x128xf32>
    %c0_11 = arith.constant 0 : index
    %c0_12 = arith.constant 0 : index
    %31 = vector.load %arg4[%c0_11, %c0_12] : memref<8x128xf32, #tpu.memory_space<vmem>>, vector<8x128xf32>
    tpu.vector_store %arg4[%c0_11, %c0_12], %30 {strides = array<i32>} : memref<8x128xf32, #tpu.memory_space<vmem>>, vector<8x128xf32>,
    return
  }
  func.func @transform_0(%arg0: i32) -> (i32, i32) {
    %c0_i32 = arith.constant 0 : i32
    %c0_i32_0 = arith.constant 0 : i32
    return %arg0, %c0_i32 : i32, i32
  }
  func.func @transform_1(%arg0: i32) -> (i32, i32) {
    %c0_i32 = arith.constant 0 : i32
    %c0_i32_0 = arith.constant 0 : i32
    %c0_i32_1 = arith.constant 0 : i32
    return %c0_i32, %c0_i32_0 : i32, i32
  }
  func.func @transform_2(%arg0: i32) -> (i32, i32) {
    %c0_i32 = arith.constant 0 : i32
    %c0_i32_0 = arith.constant 0 : i32
    %c0_i32_1 = arith.constant 0 : i32
    return %c0_i32, %c0_i32_0 : i32, i32
  }
  func.func @transform_3(%arg0: i32) -> (i32, i32) {
    %c0_i32 = arith.constant 0 : i32
    %c0_i32_0 = arith.constant 0 : i32
    return %arg0, %c0_i32 : i32, i32
  }
}

</mosaic_0001>

<llo_original>
// kernel: tpu_custom_call.1
$region0: #{tpu_custom_call.1}
  #allocation0 [shape = 'u32[]', space=smem, size = 0x4, offset = 0x4, fixed_abs, tag = 'smem constant byte address 0x4 - core index']
  #allocation1 [shape = 'u32[144,128]{1,0:T(1,128)}', space=vmem, size = 0x12000, scoped, tag = 'internal scratch']
  %s0 = inlined_call_operand.hbm [shape: f32[16,128], index: 0, kind: input, shape index: {}]
  %s1 = inlined_call_operand.hbm [shape: f32[128,128], index: 1, kind: input, shape index: {}]
  %s2 = inlined_call_operand.vmem [shape: f32[1,128], index: 2, kind: input, shape index: {}]
  %s3 = inlined_call_operand.hbm [shape: f32[16,128], index: 3, kind: output, shape index: {}]
  %s4 = sld [smem:[#allocation0]]
  $region53: #{tpu_custom_call.1} parent=0
    _
  %s6 = ssub.s32 1, %s4
  %s7 = scalar_select 0, %s6, %s4
  $region1: #{tpu_custom_call.1} parent=0
    #allocation2 [shape = 'u8[8192]{0}', space=vmem, size = 0x2000, scoped, tag = 'input window, operand 0']
    #allocation3 [shape = 's32[2]{0}', space=sflag, size = 0x8, scoped, tag = 'scoped memory for tpu_custom_call.1']
    #allocation4 [shape = 's32[2]{0}', space=sflag, size = 0x8, scoped, tag = 'scoped memory for tpu_custom_call.1']
    #allocation5 [shape = 'u8[65536]{0}', space=vmem, size = 0x10000, scoped, tag = 'input window, operand 1, single buffered']
    #allocation6 [shape = 's32[1]{0}', space=sflag, size = 0x4, scoped, tag = 'scoped memory for tpu_custom_call.1']
    #allocation7 [shape = 'u8[8192]{0}', space=vmem, size = 0x2000, scoped, tag = 'output window, operand 0']
    %8 = vsyncpa [#allocation3], 0
    %s9 = scalar_lea.sflag [#allocation3], 1
    %10 = vsyncpa %s9, 0
    %11 = vsyncpa [#allocation6], 0
    %12 = vsyncpa [#allocation4], 0
    %s13 = scalar_lea.sflag [#allocation4], 1
    %14 = vsyncpa %s13, 0
    loop: start=0, step=1, limit=4
    $region2: #{tpu_custom_call.1} parent=1 // loop_pre_header
      _
    $region3: #{tpu_custom_call.1} parent=1 // loop_header
      %s16 = sphi 0, %s20
      %p17 = scmp.ge.s32.totalorder %s16, 4
      %s26 = sphi 0, %s28
      %s29 = sphi 0, %s26
      %s30 = sphi 0, %s29
      %s46 = sphi 0, %s30
      %s50 = sphi 0, %s50
      %s52 = sphi 0, %s50
      %s53 = sphi 0, %s52
      %s67 = sphi 0, %s53
      %s71 = sphi 0, %s71
      %s73 = sphi 0, %s71
      %s74 = sphi 0, %s73
      %s88 = sphi 0, %s74
      %s94 = sphi 0, %s96
      %s97 = sphi 0, %s94
      %s98 = sphi 0, %s97
      %s114 = sphi 0, %s98
    $region4: #{tpu_custom_call.1} parent=1 // loop_header_branch
      %19 = sbr.rel (%p17) target = $region8
    $region5: #{tpu_custom_call.1} parent=1 // loop_body
      %s21 = ssub.s32 %s16, 1
      %s22 = ssub.s32 %s16, 2
      %s23 = sadd.s32 %s16, 1
      %s24 = ssub.s32 %s16, %s23
      %p25 = scmp.eq.s32.totalorder %s24, 0
      %s27 = sadd.s32 %s26, 1
      %s28 = scalar_select %p25, %s26, %s27
      %p31 = pneg %p25
      %p32 = scmp.eq.s32.totalorder %s16, 1
      %p33 = por %p31, %p32
      %p34 = scmp.ne.s32.totalorder %s26, %s29
      %p35 = scmp.eq.s32.totalorder %s16, 0
      %p36 = por %p34, %p35
      %p37 = scmp.ne.s32.totalorder %s26, %s29
      %p38 = scmp.eq.s32.totalorder %s21, 1
      %p39 = por %p37, %p38
      %p40 = scmp.ne.s32.totalorder %s29, %s30
      %p41 = scmp.eq.s32.totalorder %s21, 0
      %p42 = por %p40, %p41
      %p43 = scmp.ne.s32.totalorder %s29, %s30
      %p44 = scmp.eq.s32.totalorder %s22, 1
      %p45 = por %p43, %p44
      %p47 = scmp.ne.s32.totalorder %s30, %s46
      %p48 = scmp.eq.s32.totalorder %s22, 0
      %p49 = por %p47, %p48
      %s51 = sadd.s32 %s50, 1
      %p54 = scmp.eq.s32.totalorder %s16, 1
      %p55 = scmp.ne.s32.totalorder %s50, %s52
      %p56 = scmp.eq.s32.totalorder %s16, 0
      %p57 = por %p55, %p56
      %p58 = scmp.ne.s32.totalorder %s50, %s52
      %p59 = scmp.eq.s32.totalorder %s21, 1
      %p60 = por %p58, %p59
      %p61 = scmp.ne.s32.totalorder %s52, %s53
      %p62 = scmp.eq.s32.totalorder %s21, 0
      %p63 = por %p61, %p62
      %p64 = scmp.ne.s32.totalorder %s52, %s53
      %p65 = scmp.eq.s32.totalorder %s22, 1
      %p66 = por %p64, %p65
      %p68 = scmp.ne.s32.totalorder %s53, %s67
      %p69 = scmp.eq.s32.totalorder %s22, 0
      %p70 = por %p68, %p69
      %s72 = sadd.s32 %s71, 1
      %p75 = scmp.eq.s32.totalorder %s16, 1
      %p76 = scmp.ne.s32.totalorder %s71, %s73
      %p77 = scmp.eq.s32.totalorder %s16, 0
      %p78 = por %p76, %p77
      %p79 = scmp.ne.s32.totalorder %s71, %s73
      %p80 = scmp.eq.s32.totalorder %s21, 1
      %p81 = por %p79, %p80
      %p82 = scmp.ne.s32.totalorder %s73, %s74
      %p83 = scmp.eq.s32.totalorder %s21, 0
      %p84 = por %p82, %p83
      %p85 = scmp.ne.s32.totalorder %s73, %s74
      %p86 = scmp.eq.s32.totalorder %s22, 1
      %p87 = por %p85, %p86
      %p89 = scmp.ne.s32.totalorder %s74, %s88
      %p90 = scmp.eq.s32.totalorder %s22, 0
      %p91 = por %p89, %p90
      %s92 = ssub.s32 %s16, %s23
      %p93 = scmp.eq.s32.totalorder %s92, 0
      %s95 = sadd.s32 %s94, 1
      %s96 = scalar_select %p93, %s94, %s95
      %p99 = pneg %p93
      %p100 = scmp.eq.s32.totalorder %s16, 1
      %p101 = por %p99, %p100
      %p102 = scmp.ne.s32.totalorder %s94, %s97
      %p103 = scmp.eq.s32.totalorder %s16, 0
      %p104 = por %p102, %p103
      %p105 = scmp.ne.s32.totalorder %s94, %s97
      %p106 = scmp.eq.s32.totalorder %s21, 1
      %p107 = por %p105, %p106
      %p108 = scmp.ne.s32.totalorder %s97, %s98
      %p109 = scmp.eq.s32.totalorder %s21, 0
      %p110 = por %p108, %p109
      %p111 = scmp.ne.s32.totalorder %s97, %s98
      %p112 = scmp.eq.s32.totalorder %s22, 1
      %p113 = por %p111, %p112
      %p115 = scmp.ne.s32.totalorder %s98, %s114
      %p116 = scmp.eq.s32.totalorder %s22, 0
      %p117 = por %p115, %p116
      %p118 = scmp.le.s32.totalorder 1, %s16
      %p119 = scmp.lt.s32.totalorder %s16, 3
      %p120 = pnand %p118, %p119
      %p121 = pneg %p120
      // Predicated region
      $region9: #{tpu_custom_call.1} parent=5 // pred_check
        _
      $region10: #{tpu_custom_call.1} parent=5 // pred_check_branch
        %123 = sbr.rel (%p120) target = $region12
      $region11: #{tpu_custom_call.1} parent=5 // pred_region
        %s124 = ssub.s32 %s16, 1
        // Predicated region
        $region13: #{tpu_custom_call.1} parent=11 // pred_check
          %p125 = pneg %p63
        $region14: #{tpu_custom_call.1} parent=11 // pred_check_branch
          %127 = sbr.rel (%p125) target = $region16
        $region15: #{tpu_custom_call.1} parent=11 // pred_region
          %s129 = ssub.s32 2048, 2048
          %130 = vsyncadd [#allocation6], %s129
          %s131 = sshll.u32 [#allocation5], 4
          %s132 = int_to_ptr.vmem [resolvable:$true] %s131
          %137 = dma.hbm_to_vmem [thread:$0]  %s1, 2048, %s132, [#allocation6], 128, 128, 8
        $region16: #{tpu_custom_call.1} parent=11 // pred_fallthru
          _
        // Predicated region
        $region17: #{tpu_custom_call.1} parent=11 // pred_check
          %p138 = pneg %p84
        $region18: #{tpu_custom_call.1} parent=11 // pred_check_branch
          %140 = sbr.rel (%p138) target = $region20
        $region19: #{tpu_custom_call.1} parent=11 // pred_region
          _
        $region20: #{tpu_custom_call.1} parent=11 // pred_fallthru
          _
      $region12: #{tpu_custom_call.1} parent=5 // pred_fallthru
        _
      %p141 = scmp.lt.s32.totalorder %s16, 2
      // Predicated region
      $region21: #{tpu_custom_call.1} parent=5 // pred_check
        %p142 = pneg %p141
      $region22: #{tpu_custom_call.1} parent=5 // pred_check_branch
        %144 = sbr.rel (%p142) target = $region24
      $region23: #{tpu_custom_call.1} parent=5 // pred_region
        // Predicated region
        $region25: #{tpu_custom_call.1} parent=23 // pred_check
          %p145 = pneg %p36
        $region26: #{tpu_custom_call.1} parent=23 // pred_check_branch
          %147 = sbr.rel (%p145) target = $region28
        $region27: #{tpu_custom_call.1} parent=23 // pred_region
          %s148 = sand.u32 %s26, 1
          %s149 = scalar_lea.sflag [#allocation3], %s148
          %s150 = sand.u32 %s26, 1
          %s151 = smul.addr %s150, 8
          %s152 = scalar_lea.vmem [#allocation2], %s151
          %s154 = ssub.s32 128, 128
          %155 = vsyncadd %s149, %s154
          %s156 = smul.addr %s16, 128
          %s157 = scalar_lea.hbm %s0, %s156
          %s159 = sshll.u32 %s152, 4
          %s160 = int_to_ptr.vmem [resolvable:$true] %s159
          %162 = dma.hbm_to_vmem [thread:$0]  %s157, 128, %s160, %s149
        $region28: #{tpu_custom_call.1} parent=23 // pred_fallthru
          _
      $region24: #{tpu_custom_call.1} parent=5 // pred_fallthru
        _
      %p163 = scmp.le.s32.totalorder 1, %s16
      %p164 = scmp.lt.s32.totalorder %s16, 3
      %p165 = pnand %p163, %p164
      %p166 = pneg %p165
      // Predicated region
      $region29: #{tpu_custom_call.1} parent=5 // pred_check
        _
      $region30: #{tpu_custom_call.1} parent=5 // pred_check_branch
        %168 = sbr.rel (%p165) target = $region32
      $region31: #{tpu_custom_call.1} parent=5 // pred_region
        %s169 = ssub.s32 %s16, 1
        %s170 = sand.u32 %s29, 1
        %s171 = scalar_lea.sflag [#allocation3], %s170
        %s172 = sand.u32 %s29, 1
        %s173 = smul.addr %s172, 8
        %s174 = scalar_lea.vmem [#allocation2], %s173
        // Predicated region
        $region33: #{tpu_custom_call.1} parent=31 // pred_check
          %p175 = pneg %p42
        $region34: #{tpu_custom_call.1} parent=31 // pred_check_branch
          %177 = sbr.rel (%p175) target = $region36
        $region35: #{tpu_custom_call.1} parent=31 // pred_region
          %178 = dma.done %s171, 128
        $region36: #{tpu_custom_call.1} parent=31 // pred_fallthru
          _
        // Predicated region
        $region37: #{tpu_custom_call.1} parent=31 // pred_check
          %p179 = pneg %p63
        $region38: #{tpu_custom_call.1} parent=31 // pred_check_branch
          %181 = sbr.rel (%p179) target = $region40
        $region39: #{tpu_custom_call.1} parent=31 // pred_region
          %182 = dma.done [#allocation6], 2048
        $region40: #{tpu_custom_call.1} parent=31 // pred_fallthru
          _
        %s183 = sand.u32 %s29, 1
        %s184 = scalar_lea.sflag [#allocation3], %s183
        %s185 = sand.u32 %s29, 1
        %s186 = smul.addr %s185, 8
        %s187 = scalar_lea.vmem [#allocation2], %s186
        %p188 = pneg %p42
        %p189 = pneg %p39
        %p190 = pneg %p63
        %p191 = pneg %p60
        %p192 = pneg %p84
        %p193 = pneg %p81
        %p194 = pneg %p110
        %p195 = pneg %p107
        %s196 = sand.u32 %s97, 1
        %s197 = scalar_lea.sflag [#allocation4], %s196
        %s198 = sand.u32 %s97, 1
        %s199 = smul.addr %s198, 8
        %s200 = scalar_lea.vmem [#allocation7], %s199
        %v201 = vld [vmem:[%s174] sm:$0xff]
        %202 = vadd.xlane.f32.xlu0 %v201
        %v203 = vpop.xlane.xlu0 %202
        %v204 = vmul.f32 %v203, 0.03125
        %v205 = vsub.f32 %v201, %v204
        %v206 = vlaneseq
        %v207 = vand.u32 %v206, 127
        %vm208 = vcmp.lt.s32.totalorder %v207, 32
        %v209 = vsel %vm208, 1, 0
        %vm210 = vcmp.eq.s32.totalorder %v209, 1
        %v211 = vsel %vm210, %v205, 0.0
        %v212 = vmul.f32 %v211, %v211
        %213 = vadd.xlane.f32.xlu0 %v212
        %v214 = vpop.xlane.xlu0 %213
        %v215 = vmul.f32 %v214, 0.032258064
        %v216 = vrsqrt.pop %v215
        %v217 = vmul.f32 %v215, %v216
        %vm218 = vcmp.eq.f32.partialorder %v215, inf
        %v219 = vsel %vm218, %v215, %v217
        %vm220 = vcmp.eq.f32.partialorder %v215, 0.0
        %v221 = vand.u32 %v215, 2147483648
        %v222 = vsel %vm220, %v221, %v219
        %v223 = vadd.f32 %v222, 1e-05
        %v224 = vrcp.pop %v223
        %v225 = vmul.f32 %v205, %v224
        %v226 = vld [vmem:[#allocation5] sm:$0xff]
        %v227 = vld [vmem:[#allocation5 + $0x8] sm:$0xff]
        %v228 = vld [vmem:[#allocation5 + $0x10] sm:$0xff]
        %v229 = vld [vmem:[#allocation5 + $0x18] sm:$0xff]
        %v230 = vld [vmem:[#allocation5 + $0x20] sm:$0xff]
        %v231 = vld [vmem:[#allocation5 + $0x28] sm:$0xff]
        %v232 = vld [vmem:[#allocation5 + $0x30] sm:$0xff]
        %v233 = vld [vmem:[#allocation5 + $0x38] sm:$0xff]
        %v234 = vld [vmem:[#allocation5 + $0x40] sm:$0xff]
        %v235 = vld [vmem:[#allocation5 + $0x48] sm:$0xff]
        %v236 = vld [vmem:[#allocation5 + $0x50] sm:$0xff]
        %v237 = vld [vmem:[#allocation5 + $0x58] sm:$0xff]
        %v238 = vld [vmem:[#allocation5 + $0x60] sm:$0xff]
        %v239 = vld [vmem:[#allocation5 + $0x68] sm:$0xff]
        %v240 = vld [vmem:[#allocation5 + $0x70] sm:$0xff]
        %v241 = vld [vmem:[#allocation5 + $0x78] sm:$0xff]
        %v242 = vld [vmem:[%s2] sm:$0x1]
        %v244 = vlaneseq
        %v245 = vshrl.u32 %v244, 7
        %v246 = vsub.s32 0, %v245
        %v247 = vrot.slane %v242, %v246
        %249 = vmatprep.subr.mxu0 0.0
        %250 = vmatpush1.msra.mxu0 %v226
        %251 = vmatprep.subr.mxu0 0.0
        %252 = vmatpush1.msra.mxu0 %v227
        %253 = vmatprep.subr.mxu0 0.0
        %254 = vmatpush1.msra.mxu0 %v228
        %255 = vmatprep.subr.mxu0 0.0
        %256 = vmatpush1.msra.mxu0 %v229
        %257 = vmatprep.subr.mxu0 0.0
        %258 = vmatpush1.msra.mxu0 %v230
        %259 = vmatprep.subr.mxu0 0.0
        %260 = vmatpush1.msra.mxu0 %v231
        %261 = vmatprep.subr.mxu0 0.0
        %262 = vmatpush1.msra.mxu0 %v232
        %263 = vmatprep.subr.mxu0 0.0
        %264 = vmatpush1.msra.mxu0 %v233
        %265 = vmatprep.subr.mxu0 0.0
        %266 = vmatpush1.msra.mxu0 %v234
        %267 = vmatprep.subr.mxu0 0.0
        %268 = vmatpush1.msra.mxu0 %v235
        %269 = vmatprep.subr.mxu0 0.0
        %270 = vmatpush1.msra.mxu0 %v236
        %271 = vmatprep.subr.mxu0 0.0
        %272 = vmatpush1.msra.mxu0 %v237
        %273 = vmatprep.subr.mxu0 0.0
        %274 = vmatpush1.msra.mxu0 %v238
        %275 = vmatprep.subr.mxu0 0.0
        %276 = vmatpush1.msra.mxu0 %v239
        %277 = vmatprep.subr.mxu0 0.0
        %278 = vmatpush1.msra.mxu0 %v240
        %279 = vmatprep.subr.mxu0 0.0
        %280 = vmatpush1.msra.mxu0 %v241
        %281 = vmatprep.subr.mxu0 0.0
        %282 = vmatpush1.msra.mxu0 0.0
        %283 = vmatprep.subr.mxu0 0.0
        %284 = vmatpush1.msra.mxu0 0.0
        %285 = vmatprep.subr.mxu0 0.0
        %286 = vmatpush1.msra.mxu0 0.0
        %287 = vmatprep.subr.mxu0 0.0
        %288 = vmatpush1.msra.mxu0 0.0
        %289 = vmatprep.subr.mxu0 0.0
        %290 = vmatpush1.msra.mxu0 0.0
        %291 = vmatprep.subr.mxu0 0.0
        %292 = vmatpush1.msra.mxu0 0.0
        %293 = vmatprep.subr.mxu0 0.0
        %294 = vmatpush1.msra.mxu0 0.0
        %295 = vmatprep.subr.mxu0 0.0
        %296 = vmatpush1.msra.mxu0 0.0
        %297 = vmatprep.subr.mxu0 0.0
        %298 = vmatpush1.msra.mxu0 0.0
        %299 = vmatprep.subr.mxu0 0.0
        %300 = vmatpush1.msra.mxu0 0.0
        %301 = vmatprep.subr.mxu0 0.0
        %302 = vmatpush1.msra.mxu0 0.0
        %303 = vmatprep.subr.mxu0 0.0
        %304 = vmatpush1.msra.mxu0 0.0
        %305 = vmatprep.subr.mxu0 0.0
        %306 = vmatpush1.msra.mxu0 0.0
        %307 = vmatprep.subr.mxu0 0.0
        %308 = vmatpush1.msra.mxu0 0.0
        %309 = vmatprep.subr.mxu0 0.0
        %310 = vmatpush1.msra.mxu0 0.0
        %311 = vmatprep.subr.mxu0 0.0
        %312 = vmatpush1.msra.mxu0 0.0
        %313 = vmatprep.mubr.f32.mxu0 0.0
        %314 = vmatmul.mubr.f32.gmra.mrb[0].mxu0 %v225
        %v315 = vpop.f32.mrb[0].mxu0
        %v316 = vadd.f32 %v247, %v315
        %v317 = vpop.f32.mrb[0].mxu0
        %318 = vdwg.mxu0
        %v319 = vadd.f32 %v201, %v316
        %320 = vst [vmem:[%s200] sm:$0xff] %v319
        %s321 = sand.u32 %s97, 1
        %s322 = scalar_lea.sflag [#allocation4], %s321
        %s323 = sand.u32 %s97, 1
        %s324 = smul.addr %s323, 8
        %s325 = scalar_lea.vmem [#allocation7], %s324
        // Predicated region
        $region41: #{tpu_custom_call.1} parent=31 // pred_check
          %p326 = pneg %p107
        $region42: #{tpu_custom_call.1} parent=31 // pred_check_branch
          %328 = sbr.rel (%p326) target = $region44
        $region43: #{tpu_custom_call.1} parent=31 // pred_region
          %s330 = ssub.s32 128, 128
          %331 = vsyncadd %s322, %s330
          %s332 = smul.addr %s21, 128
          %s333 = scalar_lea.hbm %s3, %s332
          %s335 = sshll.u32 %s325, 4
          %s336 = int_to_ptr.vmem [resolvable:$true] %s335
          %338 = dma.vmem_to_hbm [thread:$0]  %s336, 128, %s333, %s322
        $region44: #{tpu_custom_call.1} parent=31 // pred_fallthru
          _
      $region32: #{tpu_custom_call.1} parent=5 // pred_fallthru
        _
      %p339 = scmp.le.s32.totalorder 2, %s16
      // Predicated region
      $region45: #{tpu_custom_call.1} parent=5 // pred_check
        %p340 = pneg %p339
      $region46: #{tpu_custom_call.1} parent=5 // pred_check_branch
        %342 = sbr.rel (%p340) target = $region48
      $region47: #{tpu_custom_call.1} parent=5 // pred_region
        %s343 = ssub.s32 %s16, 2
        // Predicated region
        $region49: #{tpu_custom_call.1} parent=47 // pred_check
          %p344 = pneg %p113
        $region50: #{tpu_custom_call.1} parent=47 // pred_check_branch
          %346 = sbr.rel (%p344) target = $region52
        $region51: #{tpu_custom_call.1} parent=47 // pred_region
          %s347 = sand.u32 %s98, 1
          %s348 = scalar_lea.sflag [#allocation4], %s347
          %s349 = sand.u32 %s98, 1
          %s350 = smul.addr %s349, 8
          %s351 = scalar_lea.vmem [#allocation7], %s350
          %352 = dma.done %s348, 128
        $region52: #{tpu_custom_call.1} parent=47 // pred_fallthru
          _
      $region48: #{tpu_custom_call.1} parent=5 // pred_fallthru
        _
    $region6: #{tpu_custom_call.1} parent=1 // loop_footer
      %s20 = sadd.s32 1, %s16
    $region7: #{tpu_custom_call.1} parent=1 // loop_footer_branch
      %15 = sbr.rel target = $region3
    $region8: #{tpu_custom_call.1} parent=1 // loop_exit
      _
    %353 = vsyncpa [#allocation3], 1
    %s354 = scalar_lea.sflag [#allocation3], 1
    %355 = vsyncpa %s354, 1
    %356 = vsyncpa [#allocation6], 1
    %357 = vsyncpa [#allocation4], 1
    %s358 = scalar_lea.sflag [#allocation4], 1
    %359 = vsyncpa %s358, 1

</llo_original>
